<compile_context>
chip_gen: v5e
topology: v5e:2x2
jax: 0.10.0
libtpu: 0.0.40
codegen_flags: <defaults>
</compile_context>

<pallas_src>
import functools

import jax
import jax.numpy as jnp
import numpy as np
from jax.experimental import pallas as pl
from jax.experimental.pallas import tpu as pltpu

LRELU_SLOPE = 0.1
COMPUTE_DTYPE = jnp.bfloat16          # MXU operand dtype; accumulation is f32
COL_TILE = 512                        # lane-axis tile (multiple of 128)
VMEM_LIMIT = 32 * 1024 * 1024         # explicit scoped-VMEM cap (safe on v7x's 64 MiB)


# ----------------------------- Pallas kernels ------------------------------

def _conv_mm_kernel(w_ref, x_ref, b_ref, o_ref, *, act):
    """o = act(w @ x + b): lane-dense conv matmul (Cout rows, B*T_out lanes)."""
    y = jnp.dot(w_ref[...], x_ref[...], preferred_element_type=jnp.float32)
    y = y + b_ref[...]
    if act:
        y = jnp.where(y > 0.0, y, LRELU_SLOPE * y)   # PyTorch leaky_relu(0.1)
    o_ref[...] = y


def _stft_mag_kernel(basis_ref, x_ref, o_ref, *, f_pad):
    """Fused real/imag DFT + magnitude: one MXU pass over a (2*Fp, n_fft) basis."""
    z = jnp.dot(basis_ref[...], x_ref[...], preferred_element_type=jnp.float32)
    re = z[:f_pad, :]
    im = z[f_pad:, :]
    o_ref[...] = jnp.sqrt(re * re + im * im + 1e-6)


# ------------------------------ call wrappers --------------------------------

def _round_up(x, m):
    return ((x + m - 1) // m) * m


def _pick_col_tile(ncols, target=COL_TILE):
    """Pad the lane axis to a multiple of 128 (unmasked vst); tile when large."""
    if ncols <= target:
        npad = max(128, _round_up(ncols, 128))
        return npad, npad
    npad = _round_up(ncols, target)
    return npad, target


def _mosaic_params():
    return pltpu.CompilerParams(
        dimension_semantics=("parallel",),   # column tiles are independent -> megacore
        vmem_limit_bytes=VMEM_LIMIT,
    )


def conv_matmul_lane_dense(w_mat, x_cols, b_col, act):
    """act(w_mat @ x_cols + b).  w_mat: (Cout, Cin*K) bf16, x_cols: (Cin*K, Ncols)."""
    r, kd = w_mat.shape
    ncols = x_cols.shape[1]
    npad, tn = _pick_col_tile(ncols)
    x_cols = x_cols.astype(COMPUTE_DTYPE)
    if npad != ncols:
        x_cols = jnp.pad(x_cols, ((0, 0), (0, npad - ncols)))
    out = pl.pallas_call(
        functools.partial(_conv_mm_kernel, act=act),
        out_shape=jax.ShapeDtypeStruct((r, npad), jnp.float32),
        grid=(npad // tn,),
        in_specs=[
            pl.BlockSpec((r, kd), lambda n: (0, 0)),     # weights stay VMEM-resident
            pl.BlockSpec((kd, tn), lambda n: (0, n)),    # pipelined activation tile
            pl.BlockSpec((r, 1), lambda n: (0, 0)),
        ],
        out_specs=pl.BlockSpec((r, tn), lambda n: (0, n)),
        compiler_params=_mosaic_params(),
    )(w_mat, x_cols, b_col)
    return out[:, :ncols] if npad != ncols else out


def stft_mag_lane_dense(basis, frames, f_pad):
    """|STFT| via one fused matmul.  basis: (2*Fp, n_fft) bf16, frames: (n_fft, Ncols)."""
    r2, kd = basis.shape
    ncols = frames.shape[1]
    npad, tn = _pick_col_tile(ncols)
    frames = frames.astype(COMPUTE_DTYPE)
    if npad != ncols:
        frames = jnp.pad(frames, ((0, 0), (0, npad - ncols)))
    out = pl.pallas_call(
        functools.partial(_stft_mag_kernel, f_pad=f_pad),
        out_shape=jax.ShapeDtypeStruct((f_pad, npad), jnp.float32),
        grid=(npad // tn,),
        in_specs=[
            pl.BlockSpec((r2, kd), lambda n: (0, 0)),    # DFT basis stays resident
            pl.BlockSpec((kd, tn), lambda n: (0, n)),
        ],
        out_specs=pl.BlockSpec((f_pad, tn), lambda n: (0, n)),
        compiler_params=_mosaic_params(),
    )(basis, frames)
    return out[:, :ncols] if npad != ncols else out


# ------------------------------- JAX glue -----------------------------------

def _im2col_cbt(x, k, stride, pad):
    """x: (C, B, T) -> (C*K, B*T_out) via K strided slices (no gather, no transpose)."""
    c, b, _ = x.shape
    if pad > 0:
        x = jnp.pad(x, ((0, 0), (0, 0), (pad, pad)))
    t_p = x.shape[-1]
    t_out = (t_p - k) // stride + 1
    cols = [x[:, :, j: j + stride * (t_out - 1) + 1: stride] for j in range(k)]
    patches = jnp.stack(cols, axis=1)                      # (C, K, B, T_out)
    return patches.reshape(c * k, b * t_out), t_out


def make_dft_basis(n_fft, win_length):
    """Windowed one-sided DFT basis (cos; -sin) with F padded to a multiple of 8."""
    n_freq = n_fft // 2 + 1
    f_pad = ((n_freq + 7) // 8) * 8
    # periodic Hann of length win_length, zero-padded (centered) to n_fft — torch semantics
    w = 0.5 * (1.0 - np.cos(2.0 * np.pi * np.arange(win_length) / win_length))
    window = np.zeros(n_fft, np.float64)
    left = (n_fft - win_length) // 2
    window[left:left + win_length] = w
    k = np.arange(n_freq)[:, None]
    n = np.arange(n_fft)[None, :]
    ang = 2.0 * np.pi * k * n / n_fft
    basis = np.zeros((2 * f_pad, n_fft), np.float32)
    basis[:n_freq] = np.cos(ang) * window[None, :]
    basis[f_pad:f_pad + n_freq] = -np.sin(ang) * window[None, :]
    return jnp.asarray(basis, COMPUTE_DTYPE), n_freq, f_pad


def spectrogram_magnitude_cbt(y, basis, n_freq, f_pad, n_fft, hop_length, pad):
    """y: (B, 1, T) -> sqrt(re^2+im^2+1e-6) in (F, B, frames) layout."""
    b = y.shape[0]
    x = y[:, 0, :]
    x = jnp.pad(x, ((0, 0), (pad, pad)))   # torchaudio `pad` = constant zeros (center=False)
    # TODO(synk): frame extraction stays as XLA strided slices; fully in-kernel framing
    # (pl.ds over the waveform) would cut this n_fft/hop-fold HBM expansion.
    frames, n_frames = _im2col_cbt(x[None], n_fft, hop_length, 0)   # (n_fft, B*frames)
    mag = stft_mag_lane_dense(basis, frames, f_pad)                 # (Fp, B*frames)
    return mag[:n_freq].reshape(n_freq, b, n_frames)                # (F, B, frames)


def avg_pool1d_cbt(x, kernel=4, stride=2, pad=2):
    # TODO(synk): AvgPool1d (count_include_pad=True) kept as cheap XLA glue, not a kernel.
    c, b, t = x.shape
    l_out = (t + 2 * pad - kernel) // stride + 1
    xp = jnp.pad(x, ((0, 0), (0, 0), (pad, pad)))
    acc = sum(xp[:, :, j: j + stride * (l_out - 1) + 1: stride] for j in range(kernel))
    return acc / float(kernel)


# --------------------------- Discriminator stack ----------------------------

# (Cout, K, stride, groups, padding) — small HiFiGAN-style 1D conv stack.
_CONV_SPECS = [
    (16, 5, 1, 1, 2),
    (16, 5, 2, 2, 2),
    (32, 5, 2, 2, 2),
    (32, 3, 1, 1, 1),
]
_POST_SPEC = (1, 3, 1, 1, 1)


def _fuse_grouped_weight(w, groups, cin):
    """(Cout, Cin//g, K) grouped conv weight -> block-diagonal (Cout, Cin*K) matmul weight."""
    cout, cin_g, k = w.shape
    w_flat = w.reshape(cout, cin_g * k)
    if groups == 1:
        return w_flat
    cout_g = cout // groups
    wm = jnp.zeros((cout, cin * k), w.dtype)
    for g in range(groups):
        wm = wm.at[g * cout_g:(g + 1) * cout_g,
                   g * cin_g * k:(g + 1) * cin_g * k].set(w_flat[g * cout_g:(g + 1) * cout_g])
    return wm


def make_disc_params(key, in_ch):
    """Deterministic DiscriminatorSpec-style weights, pre-flattened/pre-cast for the kernel."""
    # TODO(synk): weight_norm / spectral_norm reparameterization not modeled; weights are
    # used as-is (forward-pass-equivalent for fixed weights).
    params = {"convs": [], "post": None}
    cin = in_ch
    for (cout, k, s, g, p) in _CONV_SPECS:
        key, k1, k2 = jax.random.split(key, 3)
        w = 0.1 * jax.random.normal(k1, (cout, cin // g, k), jnp.float32)
        b = 0.01 * jax.random.normal(k2, (cout,), jnp.float32)
        params["convs"].append(dict(
            w_mat=_fuse_grouped_weight(w, g, cin).astype(COMPUTE_DTYPE),
            b=b.reshape(cout, 1).astype(jnp.float32),
            stride=s, pad=p, K=k))
        cin = cout
    cout, k, s, g, p = _POST_SPEC
    key, k1, k2 = jax.random.split(key, 3)
    w = 0.1 * jax.random.normal(k1, (cout, cin // g, k), jnp.float32)
    b = 0.01 * jax.random.normal(k2, (cout,), jnp.float32)
    params["post"] = dict(
        w_mat=_fuse_grouped_weight(w, g, cin).astype(COMPUTE_DTYPE),
        b=b.reshape(cout, 1).astype(jnp.float32),
        stride=s, pad=p, K=k)
    return params


def conv1d_cbt(x_cbt, layer, act):
    """PyTorch-semantics Conv1d (groups via block-diag weight) in (C, B, T) layout."""
    _, b, _ = x_cbt.shape
    patches, t_out = _im2col_cbt(x_cbt, layer["K"], layer["stride"], layer["pad"])
    y = conv_matmul_lane_dense(layer["w_mat"], patches, layer["b"], act)
    return y.reshape(layer["w_mat"].shape[0], b, t_out)


def discriminator_spec_forward(params, x_cbt):
    fmap = []
    for layer in params["convs"]:
        x_cbt = conv1d_cbt(x_cbt, layer, act=True)
        fmap.append(x_cbt)
    x_cbt = conv1d_cbt(x_cbt, params["post"], act=False)
    fmap.append(x_cbt)
    return x_cbt, fmap


def spectrogram_discriminator_forward(params_list, y, y_hat,
                                      n_fft, win_length, hop_length):
    b = y.shape[0]
    pad = (n_fft - hop_length) // 2
    basis, n_freq, f_pad = make_dft_basis(n_fft, win_length)

    # y and y_hat share the spectrogram and all conv weights: batch them so each
    # layer is one pallas_call (half the launches and weight DMA).
    yy = jnp.concatenate([y, y_hat], axis=0)                         # (2B, 1, T)
    spec = spectrogram_magnitude_cbt(yy, basis, n_freq, f_pad,
                                     n_fft, hop_length, pad)         # (F, 2B, frames)

    y_d_rs, y_d_gs, fmap_rs, fmap_gs = [], [], [], []
    for i, params in enumerate(params_list):
        if i != 0:
            spec = avg_pool1d_cbt(spec)
        out_cbt, fmaps_cbt = discriminator_spec_forward(params, spec)
        fr, fg = [], []
        for f in fmaps_cbt:                                          # back to PyTorch (B, C, T)
            f_bct = jnp.transpose(f, (1, 0, 2))
            fr.append(f_bct[:b])
            fg.append(f_bct[b:])
        out = jnp.transpose(out_cbt, (1, 0, 2)).reshape(2 * b, -1)   # torch.flatten(x, 1, -1)
        y_d_rs.append(out[:b])
        y_d_gs.append(out[b:])
        fmap_rs.append(fr)
        fmap_gs.append(fg)
    return y_d_rs, y_d_gs, fmap_rs, fmap_gs


# ---------------------------------- main -------------------------------------

if __name__ == "__main__":
    # Small shapes consistent with the module: n_fft=16, hop=4 -> F = 9 bins.
    n_fft, win_length, hop_length = 16, 16, 4
    B, T = 2, 64

    key = jax.random.PRNGKey(0)
    k_y, k_yh, k_p = jax.random.split(key, 3)
    y = jax.random.normal(k_y, (B, 1, T), jnp.float32)
    y_hat = jax.random.normal(k_yh, (B, 1, T), jnp.float32)

    in_ch = n_fft // 2 + 1
    disc_keys = jax.random.split(k_p, 3)
    params_list = [make_disc_params(disc_keys[i], in_ch) for i in range(3)]

    fwd = jax.jit(lambda a, b_: spectrogram_discriminator_forward(
        params_list, a, b_, n_fft, win_length, hop_length))
    out = fwd(y, y_hat)
    jax.block_until_ready(out)
    print("KERNEL_OK")
</pallas_src>

<mosaic_0001>
module attributes {stable_mosaic.version = 11 : i64} {
  func.func @_stft_mag_kernel(%arg0: i32, %arg1: memref<32x16xbf16, #tpu.memory_space<vmem>>, %arg2: memref<16x128xbf16, #tpu.memory_space<vmem>>, %arg3: memref<16x128xf32, #tpu.memory_space<vmem>>) attributes {dimension_semantics = [#tpu.dimension_semantics<parallel>], iteration_bounds = array<i64: 1>, scalar_prefetch = 0 : i64, scratch_operands = 0 : i64, tpu.core_type = #tpu.core_type<tc>, window_params = [{pipeline_mode = #tpu.pipeline_mode<synchronous>, transform_indices = @transform_0, window_bounds = array<i64: 32, 16>}, {transform_indices = @transform_1, window_bounds = array<i64: 16, 128>}, {transform_indices = @transform_2, window_bounds = array<i64: 16, 128>}]} {
    %c0 = arith.constant 0 : index
    %c0_0 = arith.constant 0 : index
    %0 = vector.load %arg1[%c0, %c0_0] : memref<32x16xbf16, #tpu.memory_space<vmem>>, vector<32x16xbf16>
    %c0_1 = arith.constant 0 : index
    %c0_2 = arith.constant 0 : index
    %1 = vector.load %arg2[%c0_1, %c0_2] : memref<16x128xbf16, #tpu.memory_space<vmem>>, vector<16x128xbf16>
    %cst = arith.constant dense<0.000000e+00> : vector<32x128xf32>
    %2 = tpu.matmul %0, %1, %cst {dimension_numbers = #tpu.dot_dimension_numbers<[1], [0], [0], [1], [0, 0, 1, 1], [], []>} : vector<32x16xbf16>, vector<16x128xbf16>, vector<32x128xf32> -> vector<32x128xf32>
    %3 = vector.extract_strided_slice %2 {offsets = [0, 0], sizes = [16, 128], strides = [1, 1]} : vector<32x128xf32> to vector<16x128xf32>
    %4 = vector.extract_strided_slice %2 {offsets = [16, 0], sizes = [16, 128], strides = [1, 1]} : vector<32x128xf32> to vector<16x128xf32>
    %5 = arith.mulf %3, %3 : vector<16x128xf32>
    %6 = arith.mulf %4, %4 : vector<16x128xf32>
    %7 = arith.addf %5, %6 : vector<16x128xf32>
    %cst_3 = arith.constant 9.99999997E-7 : f32
    %8 = vector.broadcast %cst_3 : f32 to vector<16x128xf32>
    %9 = arith.addf %7, %8 : vector<16x128xf32>
    %10 = math.sqrt %9 : vector<16x128xf32>
    %c0_4 = arith.constant 0 : index
    %c0_5 = arith.constant 0 : index
    %11 = vector.load %arg3[%c0_4, %c0_5] : memref<16x128xf32, #tpu.memory_space<vmem>>, vector<16x128xf32>
    tpu.vector_store %arg3[%c0_4, %c0_5], %10 {strides = array<i32>} : memref<16x128xf32, #tpu.memory_space<vmem>>, vector<16x128xf32>,
    return
  }
  func.func @transform_0(%arg0: i32) -> (i32, i32) {
    %c0_i32 = arith.constant 0 : i32
    %c0_i32_0 = arith.constant 0 : i32
    %c0_i32_1 = arith.constant 0 : i32
    return %c0_i32, %c0_i32_0 : i32, i32
  }
  func.func @transform_1(%arg0: i32) -> (i32, i32) {
    %c0_i32 = arith.constant 0 : i32
    %c0_i32_0 = arith.constant 0 : i32
    return %c0_i32, %arg0 : i32, i32
  }
  func.func @transform_2(%arg0: i32) -> (i32, i32) {
    %c0_i32 = arith.constant 0 : i32
    %c0_i32_0 = arith.constant 0 : i32
    return %c0_i32, %arg0 : i32, i32
  }
}

module attributes {stable_mosaic.version = 11 : i64} {
  func.func @_conv_mm_kernel(%arg0: i32, %arg1: memref<16x45xbf16, #tpu.memory_space<vmem>>, %arg2: memref<45x128xbf16, #tpu.memory_space<vmem>>, %arg3: memref<16x1xf32, #tpu.memory_space<vmem>>, %arg4: memref<16x128xf32, #tpu.memory_space<vmem>>) attributes {dimension_semantics = [#tpu.dimension_semantics<parallel>], iteration_bounds = array<i64: 1>, scalar_prefetch = 0 : i64, scratch_operands = 0 : i64, tpu.core_type = #tpu.core_type<tc>, window_params = [{pipeline_mode = #tpu.pipeline_mode<synchronous>, transform_indices = @transform_0, window_bounds = array<i64: 16, 45>}, {transform_indices = @transform_1, window_bounds = array<i64: 45, 128>}, {pipeline_mode = #tpu.pipeline_mode<synchronous>, transform_indices = @transform_2, window_bounds = array<i64: 16, 1>}, {transform_indices = @transform_3, window_bounds = array<i64: 16, 128>}]} {
    %c0 = arith.constant 0 : index
    %c0_0 = arith.constant 0 : index
    %0 = vector.load %arg1[%c0, %c0_0] : memref<16x45xbf16, #tpu.memory_space<vmem>>, vector<16x45xbf16>
    %c0_1 = arith.constant 0 : index
    %c0_2 = arith.constant 0 : index
    %1 = vector.load %arg2[%c0_1, %c0_2] : memref<45x128xbf16, #tpu.memory_space<vmem>>, vector<45x128xbf16>
    %cst = arith.constant dense<0.000000e+00> : vector<16x128xf32>
    %2 = tpu.matmul %0, %1, %cst {dimension_numbers = #tpu.dot_dimension_numbers<[1], [0], [0], [1], [0, 0, 1, 1], [], []>} : vector<16x45xbf16>, vector<45x128xbf16>, vector<16x128xf32> -> vector<16x128xf32>
    %c0_3 = arith.constant 0 : index
    %c0_4 = arith.constant 0 : index
    %3 = vector.load %arg3[%c0_3, %c0_4] : memref<16x1xf32, #tpu.memory_space<vmem>>, vector<16x1xf32>
    %4 = vector.broadcast %3 : vector<16x1xf32> to vector<16x128xf32>
    %5 = arith.addf %2, %4 : vector<16x128xf32>
    %cst_5 = arith.constant 0.000000e+00 : f32
    %6 = vector.broadcast %cst_5 : f32 to vector<16x128xf32>
    %7 = arith.cmpf ogt, %5, %6 : vector<16x128xf32>
    %cst_6 = arith.constant 1.000000e-01 : f32
    %8 = vector.broadcast %cst_6 : f32 to vector<16x128xf32>
    %9 = arith.mulf %8, %5 : vector<16x128xf32>
    %10 = arith.select %7, %5, %9 : vector<16x128xi1>, vector<16x128xf32>
    %c0_7 = arith.constant 0 : index
    %c0_8 = arith.constant 0 : index
    %11 = vector.load %arg4[%c0_7, %c0_8] : memref<16x128xf32, #tpu.memory_space<vmem>>, vector<16x128xf32>
    tpu.vector_store %arg4[%c0_7, %c0_8], %10 {strides = array<i32>} : memref<16x128xf32, #tpu.memory_space<vmem>>, vector<16x128xf32>,
    return
  }
  func.func @transform_0(%arg0: i32) -> (i32, i32) {
    %c0_i32 = arith.constant 0 : i32
    %c0_i32_0 = arith.constant 0 : i32
    %c0_i32_1 = arith.constant 0 : i32
    return %c0_i32, %c0_i32_0 : i32, i32
  }
  func.func @transform_1(%arg0: i32) -> (i32, i32) {
    %c0_i32 = arith.constant 0 : i32
    %c0_i32_0 = arith.constant 0 : i32
    return %c0_i32, %arg0 : i32, i32
  }
  func.func @transform_2(%arg0: i32) -> (i32, i32) {
    %c0_i32 = arith.constant 0 : i32
    %c0_i32_0 = arith.constant 0 : i32
    %c0_i32_1 = arith.constant 0 : i32
    return %c0_i32, %c0_i32_0 : i32, i32
  }
  func.func @transform_3(%arg0: i32) -> (i32, i32) {
    %c0_i32 = arith.constant 0 : i32
    %c0_i32_0 = arith.constant 0 : i32
    return %c0_i32, %arg0 : i32, i32
  }
}

module attributes {stable_mosaic.version = 11 : i64} {
  func.func @_conv_mm_kernel(%arg0: i32, %arg1: memref<16x80xbf16, #tpu.memory_space<vmem>>, %arg2: memref<80x128xbf16, #tpu.memory_space<vmem>>, %arg3: memref<16x1xf32, #tpu.memory_space<vmem>>, %arg4: memref<16x128xf32, #tpu.memory_space<vmem>>) attributes {dimension_semantics = [#tpu.dimension_semantics<parallel>], iteration_bounds = array<i64: 1>, scalar_prefetch = 0 : i64, scratch_operands = 0 : i64, tpu.core_type = #tpu.core_type<tc>, window_params = [{pipeline_mode = #tpu.pipeline_mode<synchronous>, transform_indices = @transform_0, window_bounds = array<i64: 16, 80>}, {transform_indices = @transform_1, window_bounds = array<i64: 80, 128>}, {pipeline_mode = #tpu.pipeline_mode<synchronous>, transform_indices = @transform_2, window_bounds = array<i64: 16, 1>}, {transform_indices = @transform_3, window_bounds = array<i64: 16, 128>}]} {
    %c0 = arith.constant 0 : index
    %c0_0 = arith.constant 0 : index
    %0 = vector.load %arg1[%c0, %c0_0] : memref<16x80xbf16, #tpu.memory_space<vmem>>, vector<16x80xbf16>
    %c0_1 = arith.constant 0 : index
    %c0_2 = arith.constant 0 : index
    %1 = vector.load %arg2[%c0_1, %c0_2] : memref<80x128xbf16, #tpu.memory_space<vmem>>, vector<80x128xbf16>
    %cst = arith.constant dense<0.000000e+00> : vector<16x128xf32>
    %2 = tpu.matmul %0, %1, %cst {dimension_numbers = #tpu.dot_dimension_numbers<[1], [0], [0], [1], [0, 0, 1, 1], [], []>} : vector<16x80xbf16>, vector<80x128xbf16>, vector<16x128xf32> -> vector<16x128xf32>
    %c0_3 = arith.constant 0 : index
    %c0_4 = arith.constant 0 : index
    %3 = vector.load %arg3[%c0_3, %c0_4] : memref<16x1xf32, #tpu.memory_space<vmem>>, vector<16x1xf32>
    %4 = vector.broadcast %3 : vector<16x1xf32> to vector<16x128xf32>
    %5 = arith.addf %2, %4 : vector<16x128xf32>
    %cst_5 = arith.constant 0.000000e+00 : f32
    %6 = vector.broadcast %cst_5 : f32 to vector<16x128xf32>
    %7 = arith.cmpf ogt, %5, %6 : vector<16x128xf32>
    %cst_6 = arith.constant 1.000000e-01 : f32
    %8 = vector.broadcast %cst_6 : f32 to vector<16x128xf32>
    %9 = arith.mulf %8, %5 : vector<16x128xf32>
    %10 = arith.select %7, %5, %9 : vector<16x128xi1>, vector<16x128xf32>
    %c0_7 = arith.constant 0 : index
    %c0_8 = arith.constant 0 : index
    %11 = vector.load %arg4[%c0_7, %c0_8] : memref<16x128xf32, #tpu.memory_space<vmem>>, vector<16x128xf32>
    tpu.vector_store %arg4[%c0_7, %c0_8], %10 {strides = array<i32>} : memref<16x128xf32, #tpu.memory_space<vmem>>, vector<16x128xf32>,
    return
  }
  func.func @transform_0(%arg0: i32) -> (i32, i32) {
    %c0_i32 = arith.constant 0 : i32
    %c0_i32_0 = arith.constant 0 : i32
    %c0_i32_1 = arith.constant 0 : i32
    return %c0_i32, %c0_i32_0 : i32, i32
  }
  func.func @transform_1(%arg0: i32) -> (i32, i32) {
    %c0_i32 = arith.constant 0 : i32
    %c0_i32_0 = arith.constant 0 : i32
    return %c0_i32, %arg0 : i32, i32
  }
  func.func @transform_2(%arg0: i32) -> (i32, i32) {
    %c0_i32 = arith.constant 0 : i32
    %c0_i32_0 = arith.constant 0 : i32
    %c0_i32_1 = arith.constant 0 : i32
    return %c0_i32, %c0_i32_0 : i32, i32
  }
  func.func @transform_3(%arg0: i32) -> (i32, i32) {
    %c0_i32 = arith.constant 0 : i32
    %c0_i32_0 = arith.constant 0 : i32
    return %c0_i32, %arg0 : i32, i32
  }
}

module attributes {stable_mosaic.version = 11 : i64} {
  func.func @_conv_mm_kernel(%arg0: i32, %arg1: memref<32x80xbf16, #tpu.memory_space<vmem>>, %arg2: memref<80x128xbf16, #tpu.memory_space<vmem>>, %arg3: memref<32x1xf32, #tpu.memory_space<vmem>>, %arg4: memref<32x128xf32, #tpu.memory_space<vmem>>) attributes {dimension_semantics = [#tpu.dimension_semantics<parallel>], iteration_bounds = array<i64: 1>, scalar_prefetch = 0 : i64, scratch_operands = 0 : i64, tpu.core_type = #tpu.core_type<tc>, window_params = [{pipeline_mode = #tpu.pipeline_mode<synchronous>, transform_indices = @transform_0, window_bounds = array<i64: 32, 80>}, {transform_indices = @transform_1, window_bounds = array<i64: 80, 128>}, {pipeline_mode = #tpu.pipeline_mode<synchronous>, transform_indices = @transform_2, window_bounds = array<i64: 32, 1>}, {transform_indices = @transform_3, window_bounds = array<i64: 32, 128>}]} {
    %c0 = arith.constant 0 : index
    %c0_0 = arith.constant 0 : index
    %0 = vector.load %arg1[%c0, %c0_0] : memref<32x80xbf16, #tpu.memory_space<vmem>>, vector<32x80xbf16>
    %c0_1 = arith.constant 0 : index
    %c0_2 = arith.constant 0 : index
    %1 = vector.load %arg2[%c0_1, %c0_2] : memref<80x128xbf16, #tpu.memory_space<vmem>>, vector<80x128xbf16>
    %cst = arith.constant dense<0.000000e+00> : vector<32x128xf32>
    %2 = tpu.matmul %0, %1, %cst {dimension_numbers = #tpu.dot_dimension_numbers<[1], [0], [0], [1], [0, 0, 1, 1], [], []>} : vector<32x80xbf16>, vector<80x128xbf16>, vector<32x128xf32> -> vector<32x128xf32>
    %c0_3 = arith.constant 0 : index
    %c0_4 = arith.constant 0 : index
    %3 = vector.load %arg3[%c0_3, %c0_4] : memref<32x1xf32, #tpu.memory_space<vmem>>, vector<32x1xf32>
    %4 = vector.broadcast %3 : vector<32x1xf32> to vector<32x128xf32>
    %5 = arith.addf %2, %4 : vector<32x128xf32>
    %cst_5 = arith.constant 0.000000e+00 : f32
    %6 = vector.broadcast %cst_5 : f32 to vector<32x128xf32>
    %7 = arith.cmpf ogt, %5, %6 : vector<32x128xf32>
    %cst_6 = arith.constant 1.000000e-01 : f32
    %8 = vector.broadcast %cst_6 : f32 to vector<32x128xf32>
    %9 = arith.mulf %8, %5 : vector<32x128xf32>
    %10 = arith.select %7, %5, %9 : vector<32x128xi1>, vector<32x128xf32>
    %c0_7 = arith.constant 0 : index
    %c0_8 = arith.constant 0 : index
    %11 = vector.load %arg4[%c0_7, %c0_8] : memref<32x128xf32, #tpu.memory_space<vmem>>, vector<32x128xf32>
    tpu.vector_store %arg4[%c0_7, %c0_8], %10 {strides = array<i32>} : memref<32x128xf32, #tpu.memory_space<vmem>>, vector<32x128xf32>,
    return
  }
  func.func @transform_0(%arg0: i32) -> (i32, i32) {
    %c0_i32 = arith.constant 0 : i32
    %c0_i32_0 = arith.constant 0 : i32
    %c0_i32_1 = arith.constant 0 : i32
    return %c0_i32, %c0_i32_0 : i32, i32
  }
  func.func @transform_1(%arg0: i32) -> (i32, i32) {
    %c0_i32 = arith.constant 0 : i32
    %c0_i32_0 = arith.constant 0 : i32
    return %c0_i32, %arg0 : i32, i32
  }
  func.func @transform_2(%arg0: i32) -> (i32, i32) {
    %c0_i32 = arith.constant 0 : i32
    %c0_i32_0 = arith.constant 0 : i32
    %c0_i32_1 = arith.constant 0 : i32
    return %c0_i32, %c0_i32_0 : i32, i32
  }
  func.func @transform_3(%arg0: i32) -> (i32, i32) {
    %c0_i32 = arith.constant 0 : i32
    %c0_i32_0 = arith.constant 0 : i32
    return %c0_i32, %arg0 : i32, i32
  }
}

module attributes {stable_mosaic.version = 11 : i64} {
  func.func @_conv_mm_kernel(%arg0: i32, %arg1: memref<1x96xbf16, #tpu.memory_space<vmem>>, %arg2: memref<96x128xbf16, #tpu.memory_space<vmem>>, %arg3: memref<1x1xf32, #tpu.memory_space<vmem>>, %arg4: memref<1x128xf32, #tpu.memory_space<vmem>>) attributes {dimension_semantics = [#tpu.dimension_semantics<parallel>], iteration_bounds = array<i64: 1>, scalar_prefetch = 0 : i64, scratch_operands = 0 : i64, tpu.core_type = #tpu.core_type<tc>, window_params = [{pipeline_mode = #tpu.pipeline_mode<synchronous>, transform_indices = @transform_0, window_bounds = array<i64: 1, 96>}, {transform_indices = @transform_1, window_bounds = array<i64: 96, 128>}, {pipeline_mode = #tpu.pipeline_mode<synchronous>, transform_indices = @transform_2, window_bounds = array<i64: 1, 1>}, {transform_indices = @transform_3, window_bounds = array<i64: 1, 128>}]} {
    %c0 = arith.constant 0 : index
    %c0_0 = arith.constant 0 : index
    %0 = vector.load %arg1[%c0, %c0_0] : memref<1x96xbf16, #tpu.memory_space<vmem>>, vector<1x96xbf16>
    %c0_1 = arith.constant 0 : index
    %c0_2 = arith.constant 0 : index
    %1 = vector.load %arg2[%c0_1, %c0_2] : memref<96x128xbf16, #tpu.memory_space<vmem>>, vector<96x128xbf16>
    %cst = arith.constant dense<0.000000e+00> : vector<1x128xf32>
    %2 = tpu.matmul %0, %1, %cst {dimension_numbers = #tpu.dot_dimension_numbers<[1], [0], [0], [1], [0, 0, 1, 1], [], []>} : vector<1x96xbf16>, vector<96x128xbf16>, vector<1x128xf32> -> vector<1x128xf32>
    %c0_3 = arith.constant 0 : index
    %c0_4 = arith.constant 0 : index
    %3 = vector.load %arg3[%c0_3, %c0_4] : memref<1x1xf32, #tpu.memory_space<vmem>>, vector<1x1xf32>
    %4 = vector.broadcast %3 : vector<1x1xf32> to vector<1x128xf32>
    %5 = arith.addf %2, %4 : vector<1x128xf32>
    %c0_5 = arith.constant 0 : index
    %c0_6 = arith.constant 0 : index
    %6 = vector.load %arg4[%c0_5, %c0_6] : memref<1x128xf32, #tpu.memory_space<vmem>>, vector<1x128xf32>
    tpu.vector_store %arg4[%c0_5, %c0_6], %5 {strides = array<i32>} : memref<1x128xf32, #tpu.memory_space<vmem>>, vector<1x128xf32>,
    return
  }
  func.func @transform_0(%arg0: i32) -> (i32, i32) {
    %c0_i32 = arith.constant 0 : i32
    %c0_i32_0 = arith.constant 0 : i32
    %c0_i32_1 = arith.constant 0 : i32
    return %c0_i32, %c0_i32_0 : i32, i32
  }
  func.func @transform_1(%arg0: i32) -> (i32, i32) {
    %c0_i32 = arith.constant 0 : i32
    %c0_i32_0 = arith.constant 0 : i32
    return %c0_i32, %arg0 : i32, i32
  }
  func.func @transform_2(%arg0: i32) -> (i32, i32) {
    %c0_i32 = arith.constant 0 : i32
    %c0_i32_0 = arith.constant 0 : i32
    %c0_i32_1 = arith.constant 0 : i32
    return %c0_i32, %c0_i32_0 : i32, i32
  }
  func.func @transform_3(%arg0: i32) -> (i32, i32) {
    %c0_i32 = arith.constant 0 : i32
    %c0_i32_0 = arith.constant 0 : i32
    return %c0_i32, %arg0 : i32, i32
  }
}

module attributes {stable_mosaic.version = 11 : i64} {
  func.func @_conv_mm_kernel(%arg0: i32, %arg1: memref<32x96xbf16, #tpu.memory_space<vmem>>, %arg2: memref<96x128xbf16, #tpu.memory_space<vmem>>, %arg3: memref<32x1xf32, #tpu.memory_space<vmem>>, %arg4: memref<32x128xf32, #tpu.memory_space<vmem>>) attributes {dimension_semantics = [#tpu.dimension_semantics<parallel>], iteration_bounds = array<i64: 1>, scalar_prefetch = 0 : i64, scratch_operands = 0 : i64, tpu.core_type = #tpu.core_type<tc>, window_params = [{pipeline_mode = #tpu.pipeline_mode<synchronous>, transform_indices = @transform_0, window_bounds = array<i64: 32, 96>}, {transform_indices = @transform_1, window_bounds = array<i64: 96, 128>}, {pipeline_mode = #tpu.pipeline_mode<synchronous>, transform_indices = @transform_2, window_bounds = array<i64: 32, 1>}, {transform_indices = @transform_3, window_bounds = array<i64: 32, 128>}]} {
    %c0 = arith.constant 0 : index
    %c0_0 = arith.constant 0 : index
    %0 = vector.load %arg1[%c0, %c0_0] : memref<32x96xbf16, #tpu.memory_space<vmem>>, vector<32x96xbf16>
    %c0_1 = arith.constant 0 : index
    %c0_2 = arith.constant 0 : index
    %1 = vector.load %arg2[%c0_1, %c0_2] : memref<96x128xbf16, #tpu.memory_space<vmem>>, vector<96x128xbf16>
    %cst = arith.constant dense<0.000000e+00> : vector<32x128xf32>
    %2 = tpu.matmul %0, %1, %cst {dimension_numbers = #tpu.dot_dimension_numbers<[1], [0], [0], [1], [0, 0, 1, 1], [], []>} : vector<32x96xbf16>, vector<96x128xbf16>, vector<32x128xf32> -> vector<32x128xf32>
    %c0_3 = arith.constant 0 : index
    %c0_4 = arith.constant 0 : index
    %3 = vector.load %arg3[%c0_3, %c0_4] : memref<32x1xf32, #tpu.memory_space<vmem>>, vector<32x1xf32>
    %4 = vector.broadcast %3 : vector<32x1xf32> to vector<32x128xf32>
    %5 = arith.addf %2, %4 : vector<32x128xf32>
    %cst_5 = arith.constant 0.000000e+00 : f32
    %6 = vector.broadcast %cst_5 : f32 to vector<32x128xf32>
    %7 = arith.cmpf ogt, %5, %6 : vector<32x128xf32>
    %cst_6 = arith.constant 1.000000e-01 : f32
    %8 = vector.broadcast %cst_6 : f32 to vector<32x128xf32>
    %9 = arith.mulf %8, %5 : vector<32x128xf32>
    %10 = arith.select %7, %5, %9 : vector<32x128xi1>, vector<32x128xf32>
    %c0_7 = arith.constant 0 : index
    %c0_8 = arith.constant 0 : index
    %11 = vector.load %arg4[%c0_7, %c0_8] : memref<32x128xf32, #tpu.memory_space<vmem>>, vector<32x128xf32>
    tpu.vector_store %arg4[%c0_7, %c0_8], %10 {strides = array<i32>} : memref<32x128xf32, #tpu.memory_space<vmem>>, vector<32x128xf32>,
    return
  }
  func.func @transform_0(%arg0: i32) -> (i32, i32) {
    %c0_i32 = arith.constant 0 : i32
    %c0_i32_0 = arith.constant 0 : i32
    %c0_i32_1 = arith.constant 0 : i32
    return %c0_i32, %c0_i32_0 : i32, i32
  }
  func.func @transform_1(%arg0: i32) -> (i32, i32) {
    %c0_i32 = arith.constant 0 : i32
    %c0_i32_0 = arith.constant 0 : i32
    return %c0_i32, %arg0 : i32, i32
  }
  func.func @transform_2(%arg0: i32) -> (i32, i32) {
    %c0_i32 = arith.constant 0 : i32
    %c0_i32_0 = arith.constant 0 : i32
    %c0_i32_1 = arith.constant 0 : i32
    return %c0_i32, %c0_i32_0 : i32, i32
  }
  func.func @transform_3(%arg0: i32) -> (i32, i32) {
    %c0_i32 = arith.constant 0 : i32
    %c0_i32_0 = arith.constant 0 : i32
    return %c0_i32, %arg0 : i32, i32
  }
}

</mosaic_0001>

<llo_original>
// kernel: _lambda_.16
$region0: #{_lambda_.16}
  #allocation0 [shape = 'u32[]', space=smem, size = 0x4, offset = 0x4, fixed_abs, tag = 'smem constant byte address 0x4 - core index']
  #allocation1 [shape = 'u32[72,128]{1,0:T(1,128)}', space=vmem, size = 0x9000, scoped, tag = 'internal scratch']
  %s0 = inlined_call_operand.vmem [shape: bf16[32,16], index: 0, kind: input, shape index: {}]
  %s1 = inlined_call_operand.vmem [shape: bf16[16,128], index: 1, kind: input, shape index: {}]
  %s2 = inlined_call_operand.vmem [shape: f32[16,128], index: 2, kind: output, shape index: {}]
  %s3 = sld [smem:[#allocation0]]
  $region18: #{_lambda_.16} parent=0
    _
  %s5 = ssub.s32 1, %s3
  %s6 = scalar_select 0, %s5, %s3
  // Predicated region
  $region2: #{_lambda_.16} parent=0 // pred_check
    _
  $region3: #{_lambda_.16} parent=0 // pred_check_branch
    %8 = sbr.rel (0) target = $region5
  $region4: #{_lambda_.16} parent=0 // pred_region
    _
  $region5: #{_lambda_.16} parent=0 // pred_fallthru
    _
  // Predicated region
  $region6: #{_lambda_.16} parent=0 // pred_check
    _
  $region7: #{_lambda_.16} parent=0 // pred_check_branch
    %10 = sbr.rel (0) target = $region9
  $region8: #{_lambda_.16} parent=0 // pred_region
    _
  $region9: #{_lambda_.16} parent=0 // pred_fallthru
    _
  %v12 = vld [vmem:[%s0] sm:$0xf]
  %v13 = vld [vmem:[%s0 + $0x4] sm:$0xf]
  %v14 = vld [vmem:[%s0 + $0x8] sm:$0xf]
  %v15 = vld [vmem:[%s0 + $0xc] sm:$0xf]
  %v16 = vld [vmem:[%s1] sm:$0xf]
  %v17 = vld [vmem:[%s1 + $0x4] sm:$0xf]
  %v22 = vunpack.c.l.b16 %v12
  %v23 = vunpack.c.l.b16 %v13
  %v24 = vunpack.c.l.b16 %v14
  %v25 = vunpack.c.l.b16 %v15
  %v26 = vpack.c.b16 %v23, %v22
  %v27 = vpack.c.b16 %v25, %v24
  %v30 = vunpack.c.l.b16 %v16
  %v31 = vunpack.c.l.b16 %v17
  %v32 = vpack.c.b16 %v31, %v30
  %vm34 = vcmask 130048
  %v36 = vsel %vm34, %v26, 0
  %v39 = vsel %vm34, %v27, 0
  %41 = vmatpush.bf16.msra.mxu0 0
  %42 = vmatpush.bf16.msra.mxu0 0
  %43 = vmatpush.bf16.msra.mxu0 0
  %44 = vmatpush.bf16.msra.mxu0 0
  %45 = vmatpush.bf16.msra.mxu0 0
  %46 = vmatpush.bf16.msra.mxu0 0
  %47 = vmatpush.bf16.msra.mxu0 0
  %48 = vmatpush.bf16.msra.mxu0 %v32
  %49 = vmatmul.bf16.gmra.mxu0 %v36
  %v50 = vpop.f32.mrf.mxu0
  %v51 = vadd.f32 0.0, %v50
  %v52 = vpop.f32.mrf.mxu0
  %v53 = vadd.f32 0.0, %v52
  %54 = vmatmul.bf16.gmra.mxu0 %v39
  %v55 = vpop.f32.mrf.mxu0
  %v56 = vadd.f32 0.0, %v55
  %v57 = vpop.f32.mrf.mxu0
  %v58 = vadd.f32 0.0, %v57
  %59 = vdwg.mxu0
  %v60 = vmul.f32 %v51, %v51
  %v61 = vmul.f32 %v53, %v53
  %v62 = vmul.f32 %v56, %v56
  %v63 = vmul.f32 %v58, %v58
  %v64 = vadd.f32 %v60, %v62
  %v65 = vadd.f32 %v61, %v63
  %v66 = vadd.f32 %v64, 1e-06
  %v67 = vadd.f32 %v65, 1e-06
  %v68 = vrsqrt.pop %v66
  %v69 = vmul.f32 %v68, %v66
  %v70 = vmul.f32 %v69, %v68
  %v71 = vmul.f32 0.5, %v70
  %v72 = vsub.f32 1.5, %v71
  %v73 = vmul.f32 %v68, %v72
  %v74 = vmul.f32 %v66, %v73
  %vm75 = vcmp.eq.f32.partialorder %v66, inf
  %v76 = vsel %vm75, %v66, %v74
  %vm77 = vcmp.eq.f32.partialorder %v66, 0.0
  %v78 = vand.u32 %v66, 2147483648
  %v79 = vsel %vm77, %v78, %v76
  %v80 = vrsqrt.pop %v67
  %v81 = vmul.f32 %v80, %v67
  %v82 = vmul.f32 %v81, %v80
  %v83 = vmul.f32 0.5, %v82
  %v84 = vsub.f32 1.5, %v83
  %v85 = vmul.f32 %v80, %v84
  %v86 = vmul.f32 %v67, %v85
  %vm87 = vcmp.eq.f32.partialorder %v67, inf
  %v88 = vsel %vm87, %v67, %v86
  %vm89 = vcmp.eq.f32.partialorder %v67, 0.0
  %v90 = vand.u32 %v67, 2147483648
  %v91 = vsel %vm89, %v90, %v88
  %92 = vst [vmem:[%s2] sm:$0xff] %v79
  %93 = vst [vmem:[%s2 + $0x8] sm:$0xff] %v91
  // Predicated region
  $region10: #{_lambda_.16} parent=0 // pred_check
    _
  $region11: #{_lambda_.16} parent=0 // pred_check_branch
    %95 = sbr.rel (0) target = $region13
  $region12: #{_lambda_.16} parent=0 // pred_region
    _
  $region13: #{_lambda_.16} parent=0 // pred_fallthru
    _
  // Predicated region
  $region14: #{_lambda_.16} parent=0 // pred_check
    _
  $region15: #{_lambda_.16} parent=0 // pred_check_branch
    %97 = sbr.rel (0) target = $region17
  $region16: #{_lambda_.16} parent=0 // pred_region
    _
  $region17: #{_lambda_.16} parent=0 // pred_fallthru
    _

// kernel: _lambda_.27
$region0: #{_lambda_.27}
  #allocation0 [shape = 'u32[]', space=smem, size = 0x4, offset = 0x4, fixed_abs, tag = 'smem constant byte address 0x4 - core index']
  #allocation1 [shape = 'u32[72,128]{1,0:T(1,128)}', space=vmem, size = 0x9000, scoped, tag = 'internal scratch']
  %s0 = inlined_call_operand.vmem [shape: bf16[16,45], index: 0, kind: input, shape index: {}]
  %s1 = inlined_call_operand.vmem [shape: bf16[45,128], index: 1, kind: input, shape index: {}]
  %s2 = inlined_call_operand.vmem [shape: f32[16,1], index: 2, kind: input, shape index: {}]
  %s3 = inlined_call_operand.vmem [shape: f32[16,128], index: 3, kind: output, shape index: {}]
  %s4 = sld [smem:[#allocation0]]
  $region22: #{_lambda_.27} parent=0
    _
  %s6 = ssub.s32 1, %s4
  %s7 = scalar_select 0, %s6, %s4
  // Predicated region
  $region2: #{_lambda_.27} parent=0 // pred_check
    _
  $region3: #{_lambda_.27} parent=0 // pred_check_branch
    %9 = sbr.rel (0) target = $region5
  $region4: #{_lambda_.27} parent=0 // pred_region
    _
  $region5: #{_lambda_.27} parent=0 // pred_fallthru
    _
  // Predicated region
  $region6: #{_lambda_.27} parent=0 // pred_check
    _
  $region7: #{_lambda_.27} parent=0 // pred_check_branch
    %11 = sbr.rel (0) target = $region9
  $region8: #{_lambda_.27} parent=0 // pred_region
    _
  $region9: #{_lambda_.27} parent=0 // pred_fallthru
    _
  // Predicated region
  $region10: #{_lambda_.27} parent=0 // pred_check
    _
  $region11: #{_lambda_.27} parent=0 // pred_check_branch
    %13 = sbr.rel (0) target = $region13
  $region12: #{_lambda_.27} parent=0 // pred_region
    _
  $region13: #{_lambda_.27} parent=0 // pred_fallthru
    _
  %v15 = vld [vmem:[%s0] sm:$0xf]
  %v16 = vld [vmem:[%s0 + $0x4] sm:$0xf]
  %v17 = vld [vmem:[%s1] sm:$0xf]
  %v18 = vld [vmem:[%s1 + $0x4] sm:$0xf]
  %v19 = vld [vmem:[%s1 + $0x8] sm:$0xf]
  %v20 = vld [vmem:[%s1 + $0xc] sm:$0xf]
  %v21 = vld [vmem:[%s1 + $0x10] sm:$0xf]
  %v22 = vld [vmem:[%s1 + $0x14] sm:$0x7]
  %v23 = vld [vmem:[%s2] sm:$0xff]
  %v24 = vld [vmem:[%s2 + $0x8] sm:$0xff]
  %26 = vset.pattern.permute.xlu0 0
  %27 = vperm.xlu0 %26, %v23
  %v28 = vpop.permute.xlu0 %27
  %31 = vset.pattern.permute.xlu0 0
  %32 = vperm.xlu0 %31, %v24
  %v33 = vpop.permute.xlu0 %32
  %v37 = vunpack.c.l.b16 %v15
  %v38 = vunpack.c.l.b16 %v16
  %v39 = vpack.c.b16 %v38, %v37
  %v46 = vunpack.c.l.b16 %v17
  %v47 = vunpack.c.l.b16 %v18
  %v48 = vunpack.c.l.b16 %v19
  %v49 = vunpack.c.l.b16 %v20
  %v50 = vunpack.c.l.b16 %v21
  %v51 = vunpack.c.l.b16 %v22
  %v52 = vpack.c.b16 %v47, %v46
  %v53 = vpack.c.b16 %v49, %v48
  %v54 = vpack.c.b16 %v51, %v50
  %vm57 = vcmask 367616
  %v59 = vsel %vm57, %v39, 0
  %vm61 = vcmask 1045504
  %vm62 = vcmask 1046528
  %v63 = vsel %vm61, 4294967295, 65535
  %v64 = vsel %vm62, %v63, 0
  %v66 = vand.u32 %v54, %v64
  %68 = vmatpush.bf16.msra.mxu0 0
  %69 = vmatpush.bf16.msra.mxu0 0
  %70 = vmatpush.bf16.msra.mxu0 0
  %71 = vmatpush.bf16.msra.mxu0 0
  %72 = vmatpush.bf16.msra.mxu0 0
  %73 = vmatpush.bf16.msra.mxu0 %v66
  %74 = vmatpush.bf16.msra.mxu0 %v53
  %75 = vmatpush.bf16.msra.mxu0 %v52
  %76 = vmatmul.bf16.gmra.mxu0 %v59
  %v77 = vpop.f32.mrf.mxu0
  %v78 = vadd.f32 %v28, %v77
  %v79 = vpop.f32.mrf.mxu0
  %v80 = vadd.f32 %v33, %v79
  %81 = vdwg.mxu0
  %vm82 = vcmp.gt.f32.partialorder %v78, 0.0
  %vm83 = vcmp.gt.f32.partialorder %v80, 0.0
  %v84 = vmul.f32 %v78, 0.1
  %v85 = vmul.f32 %v80, 0.1
  %v86 = vsel %vm82, %v78, %v84
  %v87 = vsel %vm83, %v80, %v85
  %88 = vst [vmem:[%s3] sm:$0xff] %v86
  %89 = vst [vmem:[%s3 + $0x8] sm:$0xff] %v87
  // Predicated region
  $region14: #{_lambda_.27} parent=0 // pred_check
    _
  $region15: #{_lambda_.27} parent=0 // pred_check_branch
    %91 = sbr.rel (0) target = $region17
  $region16: #{_lambda_.27} parent=0 // pred_region
    _
  $region17: #{_lambda_.27} parent=0 // pred_fallthru
    _
  // Predicated region
  $region18: #{_lambda_.27} parent=0 // pred_check
    _
  $region19: #{_lambda_.27} parent=0 // pred_check_branch
    %93 = sbr.rel (0) target = $region21
  $region20: #{_lambda_.27} parent=0 // pred_region
    _
  $region21: #{_lambda_.27} parent=0 // pred_fallthru
    _

// kernel: _lambda_.28
$region0: #{_lambda_.28}
  #allocation0 [shape = 'u32[]', space=smem, size = 0x4, offset = 0x4, fixed_abs, tag = 'smem constant byte address 0x4 - core index']
  #allocation1 [shape = 'u32[72,128]{1,0:T(1,128)}', space=vmem, size = 0x9000, scoped, tag = 'internal scratch']
  %s0 = inlined_call_operand.vmem [shape: bf16[16,80], index: 0, kind: input, shape index: {}]
  %s1 = inlined_call_operand.vmem [shape: bf16[80,128], index: 1, kind: input, shape index: {}]
  %s2 = inlined_call_operand.vmem [shape: f32[16,1], index: 2, kind: input, shape index: {}]
  %s3 = inlined_call_operand.vmem [shape: f32[16,128], index: 3, kind: output, shape index: {}]
  %s4 = sld [smem:[#allocation0]]
  $region22: #{_lambda_.28} parent=0
    _
  %s6 = ssub.s32 1, %s4
  %s7 = scalar_select 0, %s6, %s4
  // Predicated region
  $region2: #{_lambda_.28} parent=0 // pred_check
    _
  $region3: #{_lambda_.28} parent=0 // pred_check_branch
    %9 = sbr.rel (0) target = $region5
  $region4: #{_lambda_.28} parent=0 // pred_region
    _
  $region5: #{_lambda_.28} parent=0 // pred_fallthru
    _
  // Predicated region
  $region6: #{_lambda_.28} parent=0 // pred_check
    _
  $region7: #{_lambda_.28} parent=0 // pred_check_branch
    %11 = sbr.rel (0) target = $region9
  $region8: #{_lambda_.28} parent=0 // pred_region
    _
  $region9: #{_lambda_.28} parent=0 // pred_fallthru
    _
  // Predicated region
  $region10: #{_lambda_.28} parent=0 // pred_check
    _
  $region11: #{_lambda_.28} parent=0 // pred_check_branch
    %13 = sbr.rel (0) target = $region13
  $region12: #{_lambda_.28} parent=0 // pred_region
    _
  $region13: #{_lambda_.28} parent=0 // pred_fallthru
    _
  %v15 = vld [vmem:[%s0] sm:$0xf]
  %v16 = vld [vmem:[%s0 + $0x4] sm:$0xf]
  %v17 = vld [vmem:[%s1] sm:$0xf]
  %v18 = vld [vmem:[%s1 + $0x4] sm:$0xf]
  %v19 = vld [vmem:[%s1 + $0x8] sm:$0xf]
  %v20 = vld [vmem:[%s1 + $0xc] sm:$0xf]
  %v21 = vld [vmem:[%s1 + $0x10] sm:$0xf]
  %v22 = vld [vmem:[%s1 + $0x14] sm:$0xf]
  %v23 = vld [vmem:[%s1 + $0x18] sm:$0xf]
  %v24 = vld [vmem:[%s1 + $0x1c] sm:$0xf]
  %v25 = vld [vmem:[%s1 + $0x20] sm:$0xf]
  %v26 = vld [vmem:[%s1 + $0x24] sm:$0xf]
  %v27 = vld [vmem:[%s2] sm:$0xff]
  %v28 = vld [vmem:[%s2 + $0x8] sm:$0xff]
  %30 = vset.pattern.permute.xlu0 0
  %31 = vperm.xlu0 %30, %v27
  %v32 = vpop.permute.xlu0 %31
  %35 = vset.pattern.permute.xlu0 0
  %36 = vperm.xlu0 %35, %v28
  %v37 = vpop.permute.xlu0 %36
  %v41 = vunpack.c.l.b16 %v15
  %v42 = vunpack.c.l.b16 %v16
  %v43 = vpack.c.b16 %v42, %v41
  %v54 = vunpack.c.l.b16 %v17
  %v55 = vunpack.c.l.b16 %v18
  %v56 = vunpack.c.l.b16 %v19
  %v57 = vunpack.c.l.b16 %v20
  %v58 = vunpack.c.l.b16 %v21
  %v59 = vunpack.c.l.b16 %v22
  %v60 = vunpack.c.l.b16 %v23
  %v61 = vunpack.c.l.b16 %v24
  %v62 = vunpack.c.l.b16 %v25
  %v63 = vunpack.c.l.b16 %v26
  %v64 = vpack.c.b16 %v55, %v54
  %v65 = vpack.c.b16 %v57, %v56
  %v66 = vpack.c.b16 %v59, %v58
  %v67 = vpack.c.b16 %v61, %v60
  %v68 = vpack.c.b16 %v63, %v62
  %vm74 = vcmask 654336
  %v76 = vsel %vm74, %v43, 0
  %78 = vmatpush.bf16.msra.mxu0 0
  %79 = vmatpush.bf16.msra.mxu0 0
  %80 = vmatpush.bf16.msra.mxu0 0
  %81 = vmatpush.bf16.msra.mxu0 %v68
  %82 = vmatpush.bf16.msra.mxu0 %v67
  %83 = vmatpush.bf16.msra.mxu0 %v66
  %84 = vmatpush.bf16.msra.mxu0 %v65
  %85 = vmatpush.bf16.msra.mxu0 %v64
  %86 = vmatmul.bf16.gmra.mxu0 %v76
  %v87 = vpop.f32.mrf.mxu0
  %v88 = vadd.f32 %v32, %v87
  %v89 = vpop.f32.mrf.mxu0
  %v90 = vadd.f32 %v37, %v89
  %91 = vdwg.mxu0
  %vm92 = vcmp.gt.f32.partialorder %v88, 0.0
  %vm93 = vcmp.gt.f32.partialorder %v90, 0.0
  %v94 = vmul.f32 %v88, 0.1
  %v95 = vmul.f32 %v90, 0.1
  %v96 = vsel %vm92, %v88, %v94
  %v97 = vsel %vm93, %v90, %v95
  %98 = vst [vmem:[%s3] sm:$0xff] %v96
  %99 = vst [vmem:[%s3 + $0x8] sm:$0xff] %v97
  // Predicated region
  $region14: #{_lambda_.28} parent=0 // pred_check
    _
  $region15: #{_lambda_.28} parent=0 // pred_check_branch
    %101 = sbr.rel (0) target = $region17
  $region16: #{_lambda_.28} parent=0 // pred_region
    _
  $region17: #{_lambda_.28} parent=0 // pred_fallthru
    _
  // Predicated region
  $region18: #{_lambda_.28} parent=0 // pred_check
    _
  $region19: #{_lambda_.28} parent=0 // pred_check_branch
    %103 = sbr.rel (0) target = $region21
  $region20: #{_lambda_.28} parent=0 // pred_region
    _
  $region21: #{_lambda_.28} parent=0 // pred_fallthru
    _

// kernel: _lambda_.29
$region0: #{_lambda_.29}
  #allocation0 [shape = 'u32[]', space=smem, size = 0x4, offset = 0x4, fixed_abs, tag = 'smem constant byte address 0x4 - core index']
  #allocation1 [shape = 'u32[72,128]{1,0:T(1,128)}', space=vmem, size = 0x9000, scoped, tag = 'internal scratch']
  %s0 = inlined_call_operand.vmem [shape: bf16[32,80], index: 0, kind: input, shape index: {}]
  %s1 = inlined_call_operand.vmem [shape: bf16[80,128], index: 1, kind: input, shape index: {}]
  %s2 = inlined_call_operand.vmem [shape: f32[32,1], index: 2, kind: input, shape index: {}]
  %s3 = inlined_call_operand.vmem [shape: f32[32,128], index: 3, kind: output, shape index: {}]
  %s4 = sld [smem:[#allocation0]]
  $region22: #{_lambda_.29} parent=0
    _
  %s6 = ssub.s32 1, %s4
  %s7 = scalar_select 0, %s6, %s4
  // Predicated region
  $region2: #{_lambda_.29} parent=0 // pred_check
    _
  $region3: #{_lambda_.29} parent=0 // pred_check_branch
    %9 = sbr.rel (0) target = $region5
  $region4: #{_lambda_.29} parent=0 // pred_region
    _
  $region5: #{_lambda_.29} parent=0 // pred_fallthru
    _
  // Predicated region
  $region6: #{_lambda_.29} parent=0 // pred_check
    _
  $region7: #{_lambda_.29} parent=0 // pred_check_branch
    %11 = sbr.rel (0) target = $region9
  $region8: #{_lambda_.29} parent=0 // pred_region
    _
  $region9: #{_lambda_.29} parent=0 // pred_fallthru
    _
  // Predicated region
  $region10: #{_lambda_.29} parent=0 // pred_check
    _
  $region11: #{_lambda_.29} parent=0 // pred_check_branch
    %13 = sbr.rel (0) target = $region13
  $region12: #{_lambda_.29} parent=0 // pred_region
    _
  $region13: #{_lambda_.29} parent=0 // pred_fallthru
    _
  %v15 = vld [vmem:[%s0] sm:$0xf]
  %v16 = vld [vmem:[%s0 + $0x4] sm:$0xf]
  %v17 = vld [vmem:[%s0 + $0x8] sm:$0xf]
  %v18 = vld [vmem:[%s0 + $0xc] sm:$0xf]
  %v19 = vld [vmem:[%s1] sm:$0xf]
  %v20 = vld [vmem:[%s1 + $0x4] sm:$0xf]
  %v21 = vld [vmem:[%s1 + $0x8] sm:$0xf]
  %v22 = vld [vmem:[%s1 + $0xc] sm:$0xf]
  %v23 = vld [vmem:[%s1 + $0x10] sm:$0xf]
  %v24 = vld [vmem:[%s1 + $0x14] sm:$0xf]
  %v25 = vld [vmem:[%s1 + $0x18] sm:$0xf]
  %v26 = vld [vmem:[%s1 + $0x1c] sm:$0xf]
  %v27 = vld [vmem:[%s1 + $0x20] sm:$0xf]
  %v28 = vld [vmem:[%s1 + $0x24] sm:$0xf]
  %v29 = vld [vmem:[%s2] sm:$0xff]
  %v30 = vld [vmem:[%s2 + $0x8] sm:$0xff]
  %v31 = vld [vmem:[%s2 + $0x10] sm:$0xff]
  %v32 = vld [vmem:[%s2 + $0x18] sm:$0xff]
  %34 = vset.pattern.permute.xlu0 0
  %35 = vperm.xlu0 %34, %v29
  %v36 = vpop.permute.xlu0 %35
  %39 = vset.pattern.permute.xlu0 0
  %40 = vperm.xlu0 %39, %v30
  %v41 = vpop.permute.xlu0 %40
  %44 = vset.pattern.permute.xlu0 0
  %45 = vperm.xlu0 %44, %v31
  %v46 = vpop.permute.xlu0 %45
  %49 = vset.pattern.permute.xlu0 0
  %50 = vperm.xlu0 %49, %v32
  %v51 = vpop.permute.xlu0 %50
  %v57 = vunpack.c.l.b16 %v15
  %v58 = vunpack.c.l.b16 %v16
  %v59 = vunpack.c.l.b16 %v17
  %v60 = vunpack.c.l.b16 %v18
  %v61 = vpack.c.b16 %v58, %v57
  %v62 = vpack.c.b16 %v60, %v59
  %v73 = vunpack.c.l.b16 %v19
  %v74 = vunpack.c.l.b16 %v20
  %v75 = vunpack.c.l.b16 %v21
  %v76 = vunpack.c.l.b16 %v22
  %v77 = vunpack.c.l.b16 %v23
  %v78 = vunpack.c.l.b16 %v24
  %v79 = vunpack.c.l.b16 %v25
  %v80 = vunpack.c.l.b16 %v26
  %v81 = vunpack.c.l.b16 %v27
  %v82 = vunpack.c.l.b16 %v28
  %v83 = vpack.c.b16 %v74, %v73
  %v84 = vpack.c.b16 %v76, %v75
  %v85 = vpack.c.b16 %v78, %v77
  %v86 = vpack.c.b16 %v80, %v79
  %v87 = vpack.c.b16 %v82, %v81
  %vm93 = vcmask 654336
  %v95 = vsel %vm93, %v61, 0
  %v98 = vsel %vm93, %v62, 0
  %100 = vmatpush.bf16.msra.mxu0 0
  %101 = vmatpush.bf16.msra.mxu0 0
  %102 = vmatpush.bf16.msra.mxu0 0
  %103 = vmatpush.bf16.msra.mxu0 %v87
  %104 = vmatpush.bf16.msra.mxu0 %v86
  %105 = vmatpush.bf16.msra.mxu0 %v85
  %106 = vmatpush.bf16.msra.mxu0 %v84
  %107 = vmatpush.bf16.msra.mxu0 %v83
  %108 = vmatmul.bf16.gmra.mxu0 %v95
  %v109 = vpop.f32.mrf.mxu0
  %v110 = vadd.f32 %v36, %v109
  %v111 = vpop.f32.mrf.mxu0
  %v112 = vadd.f32 %v41, %v111
  %113 = vmatmul.bf16.gmra.mxu0 %v98
  %v114 = vpop.f32.mrf.mxu0
  %v115 = vadd.f32 %v46, %v114
  %v116 = vpop.f32.mrf.mxu0
  %v117 = vadd.f32 %v51, %v116
  %118 = vdwg.mxu0
  %vm119 = vcmp.gt.f32.partialorder %v110, 0.0
  %vm120 = vcmp.gt.f32.partialorder %v112, 0.0
  %vm121 = vcmp.gt.f32.partialorder %v115, 0.0
  %vm122 = vcmp.gt.f32.partialorder %v117, 0.0
  %v123 = vmul.f32 %v110, 0.1
  %v124 = vmul.f32 %v112, 0.1
  %v125 = vmul.f32 %v115, 0.1
  %v126 = vmul.f32 %v117, 0.1
  %v127 = vsel %vm119, %v110, %v123
  %v128 = vsel %vm120, %v112, %v124
  %v129 = vsel %vm121, %v115, %v125
  %v130 = vsel %vm122, %v117, %v126
  %131 = vst [vmem:[%s3] sm:$0xff] %v127
  %132 = vst [vmem:[%s3 + $0x8] sm:$0xff] %v128
  %133 = vst [vmem:[%s3 + $0x10] sm:$0xff] %v129
  %134 = vst [vmem:[%s3 + $0x18] sm:$0xff] %v130
  // Predicated region
  $region14: #{_lambda_.29} parent=0 // pred_check
    _
  $region15: #{_lambda_.29} parent=0 // pred_check_branch
    %136 = sbr.rel (0) target = $region17
  $region16: #{_lambda_.29} parent=0 // pred_region
    _
  $region17: #{_lambda_.29} parent=0 // pred_fallthru
    _
  // Predicated region
  $region18: #{_lambda_.29} parent=0 // pred_check
    _
  $region19: #{_lambda_.29} parent=0 // pred_check_branch
    %138 = sbr.rel (0) target = $region21
  $region20: #{_lambda_.29} parent=0 // pred_region
    _
  $region21: #{_lambda_.29} parent=0 // pred_fallthru
    _

// kernel: _lambda_.31
$region0: #{_lambda_.31}
  #allocation0 [shape = 'u32[]', space=smem, size = 0x4, offset = 0x4, fixed_abs, tag = 'smem constant byte address 0x4 - core index']
  #allocation1 [shape = 'u32[72,128]{1,0:T(1,128)}', space=vmem, size = 0x9000, scoped, tag = 'internal scratch']
  #allocation2 [shape = 'f32[1,1]{1,0:T(1,128)S(1)}', space=vmem, size = 0x200, scoped, tag = 'scoped memory for _lambda_.31']
  %s0 = inlined_call_operand.vmem [shape: bf16[1,96], index: 0, kind: input, shape index: {}]
  %s1 = inlined_call_operand.vmem [shape: bf16[96,128], index: 1, kind: input, shape index: {}]
  %s2 = inlined_call_operand.<no memory space> [shape: f32[1,1], index: 2, kind: input, shape index: {}]
  %s3 = inlined_call_operand.vmem [shape: f32[1,128], index: 3, kind: output, shape index: {}]
  %s4 = sld [smem:[#allocation0]]
  $region22: #{_lambda_.31} parent=0
    _
  %s6 = ssub.s32 1, %s4
  %s7 = scalar_select 0, %s6, %s4
  %v8 = vstv %s2
  %9 = vst [vmem:[#allocation2] sm:$0x1] %v8
  // Predicated region
  $region2: #{_lambda_.31} parent=0 // pred_check
    _
  $region3: #{_lambda_.31} parent=0 // pred_check_branch
    %11 = sbr.rel (0) target = $region5
  $region4: #{_lambda_.31} parent=0 // pred_region
    _
  $region5: #{_lambda_.31} parent=0 // pred_fallthru
    _
  // Predicated region
  $region6: #{_lambda_.31} parent=0 // pred_check
    _
  $region7: #{_lambda_.31} parent=0 // pred_check_branch
    %13 = sbr.rel (0) target = $region9
  $region8: #{_lambda_.31} parent=0 // pred_region
    _
  $region9: #{_lambda_.31} parent=0 // pred_fallthru
    _
  // Predicated region
  $region10: #{_lambda_.31} parent=0 // pred_check
    _
  $region11: #{_lambda_.31} parent=0 // pred_check_branch
    %15 = sbr.rel (0) target = $region13
  $region12: #{_lambda_.31} parent=0 // pred_region
    _
  $region13: #{_lambda_.31} parent=0 // pred_fallthru
    _
  %v17 = vld [vmem:[%s0] sm:$0x1]
  %v18 = vld [vmem:[%s1] sm:$0xf]
  %v19 = vld [vmem:[%s1 + $0x4] sm:$0xf]
  %v20 = vld [vmem:[%s1 + $0x8] sm:$0xf]
  %v21 = vld [vmem:[%s1 + $0xc] sm:$0xf]
  %v22 = vld [vmem:[%s1 + $0x10] sm:$0xf]
  %v23 = vld [vmem:[%s1 + $0x14] sm:$0xf]
  %v24 = vld [vmem:[%s1 + $0x18] sm:$0xf]
  %v25 = vld [vmem:[%s1 + $0x1c] sm:$0xf]
  %v26 = vld [vmem:[%s1 + $0x20] sm:$0xf]
  %v27 = vld [vmem:[%s1 + $0x24] sm:$0xf]
  %v28 = vld [vmem:[%s1 + $0x28] sm:$0xf]
  %v29 = vld [vmem:[%s1 + $0x2c] sm:$0xf]
  %v30 = vld [vmem:[#allocation2] sm:$0x1]
  %32 = vset.pattern.permute.xlu0 0
  %33 = vperm.xlu0 %32, %v30
  %v34 = vpop.permute.xlu0 %33
  %v36 = vperm.slane %v34, 0
  %v49 = vunpack.c.l.b16 %v18
  %v50 = vunpack.c.l.b16 %v19
  %v51 = vunpack.c.l.b16 %v20
  %v52 = vunpack.c.l.b16 %v21
  %v53 = vunpack.c.l.b16 %v22
  %v54 = vunpack.c.l.b16 %v23
  %v55 = vunpack.c.l.b16 %v24
  %v56 = vunpack.c.l.b16 %v25
  %v57 = vunpack.c.l.b16 %v26
  %v58 = vunpack.c.l.b16 %v27
  %v59 = vunpack.c.l.b16 %v28
  %v60 = vunpack.c.l.b16 %v29
  %v61 = vpack.c.b16 %v50, %v49
  %v62 = vpack.c.b16 %v52, %v51
  %v63 = vpack.c.b16 %v54, %v53
  %v64 = vpack.c.b16 %v56, %v55
  %v65 = vpack.c.b16 %v58, %v57
  %v66 = vpack.c.b16 %v60, %v59
  %vm73 = vcmask 785408
  %v75 = vsel %vm73, %v17, 0
  %77 = vmatpush.bf16.msra.mxu0 0
  %78 = vmatpush.bf16.msra.mxu0 0
  %79 = vmatpush.bf16.msra.mxu0 %v66
  %80 = vmatpush.bf16.msra.mxu0 %v65
  %81 = vmatpush.bf16.msra.mxu0 %v64
  %82 = vmatpush.bf16.msra.mxu0 %v63
  %83 = vmatpush.bf16.msra.mxu0 %v62
  %84 = vmatpush.bf16.msra.mxu0 %v61
  %85 = vmatmul.bf16.gmra.mxu0 %v75
  %v86 = vpop.f32.mrf.mxu0
  %v87 = vadd.f32 %v36, %v86
  %v88 = vpop.f32.mrf.mxu0
  %89 = vdwg.mxu0
  %90 = vst [vmem:[%s3] sm:$0x1] %v87
  // Predicated region
  $region14: #{_lambda_.31} parent=0 // pred_check
    _
  $region15: #{_lambda_.31} parent=0 // pred_check_branch
    %92 = sbr.rel (0) target = $region17
  $region16: #{_lambda_.31} parent=0 // pred_region
    _
  $region17: #{_lambda_.31} parent=0 // pred_fallthru
    _
  // Predicated region
  $region18: #{_lambda_.31} parent=0 // pred_check
    _
  $region19: #{_lambda_.31} parent=0 // pred_check_branch
    %94 = sbr.rel (0) target = $region21
  $region20: #{_lambda_.31} parent=0 // pred_region
    _
  $region21: #{_lambda_.31} parent=0 // pred_fallthru
    _

// kernel: _lambda_.30
$region0: #{_lambda_.30}
  #allocation0 [shape = 'u32[]', space=smem, size = 0x4, offset = 0x4, fixed_abs, tag = 'smem constant byte address 0x4 - core index']
  #allocation1 [shape = 'u32[72,128]{1,0:T(1,128)}', space=vmem, size = 0x9000, scoped, tag = 'internal scratch']
  %s0 = inlined_call_operand.vmem [shape: bf16[32,96], index: 0, kind: input, shape index: {}]
  %s1 = inlined_call_operand.vmem [shape: bf16[96,128], index: 1, kind: input, shape index: {}]
  %s2 = inlined_call_operand.vmem [shape: f32[32,1], index: 2, kind: input, shape index: {}]
  %s3 = inlined_call_operand.vmem [shape: f32[32,128], index: 3, kind: output, shape index: {}]
  %s4 = sld [smem:[#allocation0]]
  $region22: #{_lambda_.30} parent=0
    _
  %s6 = ssub.s32 1, %s4
  %s7 = scalar_select 0, %s6, %s4
  // Predicated region
  $region2: #{_lambda_.30} parent=0 // pred_check
    _
  $region3: #{_lambda_.30} parent=0 // pred_check_branch
    %9 = sbr.rel (0) target = $region5
  $region4: #{_lambda_.30} parent=0 // pred_region
    _
  $region5: #{_lambda_.30} parent=0 // pred_fallthru
    _
  // Predicated region
  $region6: #{_lambda_.30} parent=0 // pred_check
    _
  $region7: #{_lambda_.30} parent=0 // pred_check_branch
    %11 = sbr.rel (0) target = $region9
  $region8: #{_lambda_.30} parent=0 // pred_region
    _
  $region9: #{_lambda_.30} parent=0 // pred_fallthru
    _
  // Predicated region
  $region10: #{_lambda_.30} parent=0 // pred_check
    _
  $region11: #{_lambda_.30} parent=0 // pred_check_branch
    %13 = sbr.rel (0) target = $region13
  $region12: #{_lambda_.30} parent=0 // pred_region
    _
  $region13: #{_lambda_.30} parent=0 // pred_fallthru
    _
  %v15 = vld [vmem:[%s0] sm:$0xf]
  %v16 = vld [vmem:[%s0 + $0x4] sm:$0xf]
  %v17 = vld [vmem:[%s0 + $0x8] sm:$0xf]
  %v18 = vld [vmem:[%s0 + $0xc] sm:$0xf]
  %v19 = vld [vmem:[%s1] sm:$0xf]
  %v20 = vld [vmem:[%s1 + $0x4] sm:$0xf]
  %v21 = vld [vmem:[%s1 + $0x8] sm:$0xf]
  %v22 = vld [vmem:[%s1 + $0xc] sm:$0xf]
  %v23 = vld [vmem:[%s1 + $0x10] sm:$0xf]
  %v24 = vld [vmem:[%s1 + $0x14] sm:$0xf]
  %v25 = vld [vmem:[%s1 + $0x18] sm:$0xf]
  %v26 = vld [vmem:[%s1 + $0x1c] sm:$0xf]
  %v27 = vld [vmem:[%s1 + $0x20] sm:$0xf]
  %v28 = vld [vmem:[%s1 + $0x24] sm:$0xf]
  %v29 = vld [vmem:[%s1 + $0x28] sm:$0xf]
  %v30 = vld [vmem:[%s1 + $0x2c] sm:$0xf]
  %v31 = vld [vmem:[%s2] sm:$0xff]
  %v32 = vld [vmem:[%s2 + $0x8] sm:$0xff]
  %v33 = vld [vmem:[%s2 + $0x10] sm:$0xff]
  %v34 = vld [vmem:[%s2 + $0x18] sm:$0xff]
  %36 = vset.pattern.permute.xlu0 0
  %37 = vperm.xlu0 %36, %v31
  %v38 = vpop.permute.xlu0 %37
  %41 = vset.pattern.permute.xlu0 0
  %42 = vperm.xlu0 %41, %v32
  %v43 = vpop.permute.xlu0 %42
  %46 = vset.pattern.permute.xlu0 0
  %47 = vperm.xlu0 %46, %v33
  %v48 = vpop.permute.xlu0 %47
  %51 = vset.pattern.permute.xlu0 0
  %52 = vperm.xlu0 %51, %v34
  %v53 = vpop.permute.xlu0 %52
  %v59 = vunpack.c.l.b16 %v15
  %v60 = vunpack.c.l.b16 %v16
  %v61 = vunpack.c.l.b16 %v17
  %v62 = vunpack.c.l.b16 %v18
  %v63 = vpack.c.b16 %v60, %v59
  %v64 = vpack.c.b16 %v62, %v61
  %v77 = vunpack.c.l.b16 %v19
  %v78 = vunpack.c.l.b16 %v20
  %v79 = vunpack.c.l.b16 %v21
  %v80 = vunpack.c.l.b16 %v22
  %v81 = vunpack.c.l.b16 %v23
  %v82 = vunpack.c.l.b16 %v24
  %v83 = vunpack.c.l.b16 %v25
  %v84 = vunpack.c.l.b16 %v26
  %v85 = vunpack.c.l.b16 %v27
  %v86 = vunpack.c.l.b16 %v28
  %v87 = vunpack.c.l.b16 %v29
  %v88 = vunpack.c.l.b16 %v30
  %v89 = vpack.c.b16 %v78, %v77
  %v90 = vpack.c.b16 %v80, %v79
  %v91 = vpack.c.b16 %v82, %v81
  %v92 = vpack.c.b16 %v84, %v83
  %v93 = vpack.c.b16 %v86, %v85
  %v94 = vpack.c.b16 %v88, %v87
  %vm101 = vcmask 785408
  %v103 = vsel %vm101, %v63, 0
  %v106 = vsel %vm101, %v64, 0
  %108 = vmatpush.bf16.msra.mxu0 0
  %109 = vmatpush.bf16.msra.mxu0 0
  %110 = vmatpush.bf16.msra.mxu0 %v94
  %111 = vmatpush.bf16.msra.mxu0 %v93
  %112 = vmatpush.bf16.msra.mxu0 %v92
  %113 = vmatpush.bf16.msra.mxu0 %v91
  %114 = vmatpush.bf16.msra.mxu0 %v90
  %115 = vmatpush.bf16.msra.mxu0 %v89
  %116 = vmatmul.bf16.gmra.mxu0 %v103
  %v117 = vpop.f32.mrf.mxu0
  %v118 = vadd.f32 %v38, %v117
  %v119 = vpop.f32.mrf.mxu0
  %v120 = vadd.f32 %v43, %v119
  %121 = vmatmul.bf16.gmra.mxu0 %v106
  %v122 = vpop.f32.mrf.mxu0
  %v123 = vadd.f32 %v48, %v122
  %v124 = vpop.f32.mrf.mxu0
  %v125 = vadd.f32 %v53, %v124
  %126 = vdwg.mxu0
  %vm127 = vcmp.gt.f32.partialorder %v118, 0.0
  %vm128 = vcmp.gt.f32.partialorder %v120, 0.0
  %vm129 = vcmp.gt.f32.partialorder %v123, 0.0
  %vm130 = vcmp.gt.f32.partialorder %v125, 0.0
  %v131 = vmul.f32 %v118, 0.1
  %v132 = vmul.f32 %v120, 0.1
  %v133 = vmul.f32 %v123, 0.1
  %v134 = vmul.f32 %v125, 0.1
  %v135 = vsel %vm127, %v118, %v131
  %v136 = vsel %vm128, %v120, %v132
  %v137 = vsel %vm129, %v123, %v133
  %v138 = vsel %vm130, %v125, %v134
  %139 = vst [vmem:[%s3] sm:$0xff] %v135
  %140 = vst [vmem:[%s3 + $0x8] sm:$0xff] %v136
  %141 = vst [vmem:[%s3 + $0x10] sm:$0xff] %v137
  %142 = vst [vmem:[%s3 + $0x18] sm:$0xff] %v138
  // Predicated region
  $region14: #{_lambda_.30} parent=0 // pred_check
    _
  $region15: #{_lambda_.30} parent=0 // pred_check_branch
    %144 = sbr.rel (0) target = $region17
  $region16: #{_lambda_.30} parent=0 // pred_region
    _
  $region17: #{_lambda_.30} parent=0 // pred_fallthru
    _
  // Predicated region
  $region18: #{_lambda_.30} parent=0 // pred_check
    _
  $region19: #{_lambda_.30} parent=0 // pred_check_branch
    %146 = sbr.rel (0) target = $region21
  $region20: #{_lambda_.30} parent=0 // pred_region
    _
  $region21: #{_lambda_.30} parent=0 // pred_fallthru
    _

</llo_original>
